<compile_context>
chip_gen: v5e
topology: v5e:2x2
jax: 0.10.0
libtpu: 0.0.40
codegen_flags: <defaults>
</compile_context>

<pallas_src>
import jax
import jax.numpy as jnp
from jax import lax
from jax.experimental import pallas as pl
from jax.experimental.pallas import tpu as pltpu


_LANES = 128
_MAX_TILE = 8192      # batch rows per grid step (~1 MiB per f32 operand at D=32)
_MIN_GRID = 4         # aim for >=4 grid steps so v7x's 2 TensorCores both get work


def _round_up(x, m):
    return ((x + m - 1) // m) * m


def _batch_tiling(B):
    """Pick (tile_rows, grid_len) for the batch dimension.

    - tiles are multiples of 128 rows (lane quantum for the (1, TB) outputs),
      capped at _MAX_TILE,
    - at least _MIN_GRID tiles whenever the batch allows it (v7x megacore),
    - no input padding: the last tile may be partial; Pallas masks the edge.
    """
    if B <= _LANES:
        # Single block equal to the full array -> no (8,128) constraints apply.
        return B, 1
    target = _round_up(pl.cdiv(B, _MIN_GRID), _LANES)
    tb = min(_MAX_TILE, target, (B // _LANES) * _LANES)  # keep block <= array
    return tb, pl.cdiv(B, tb)


# ---------------------------------------------------------------------------
# Kernels
# ---------------------------------------------------------------------------
def _row_dot_lane_dense(a, b):
    """Per-row dot product sum(a*b, axis=1), returned lane-dense as (1, TB).

    Computed as ones(1, D) @ (a*b)^T (contract the minor dims of both
    operands, the natural `x @ y.T` MXU pattern) so the batch lands on lanes
    and the store is unmasked / lane-dense.  Inputs must already be f32.
    """
    prod = a * b                                         # (TB, D) f32
    ones_row = jnp.ones((1, a.shape[-1]), jnp.float32)   # (1, D)
    return lax.dot_general(
        ones_row, prod,
        dimension_numbers=(((1,), (1,)), ((), ())),
        preferred_element_type=jnp.float32)              # (1, TB)


def _ctr_kernel(u_ref, i_ref, o_ref):
    # ctr: sigmoid(sum(u * i, dim=1)) as a lane-dense (1, TB) row.
    # Upcast before the elementwise product (v5e VPU has no bf16; VPU has slack).
    u = u_ref[...].astype(jnp.float32)
    i = i_ref[...].astype(jnp.float32)
    o_ref[...] = jax.nn.sigmoid(_row_dot_lane_dense(u, i))


def _cvr_hidden(u, i, w1u_ref, w1i_ref, b1_ref):
    # concat([u, i]) @ W1 computed as u @ W1[:D] + i @ W1[D:] (no in-kernel
    # concatenate); bf16 or f32 operands go straight to the MXU, f32 accumulate.
    h = (jnp.dot(u, w1u_ref[...], preferred_element_type=jnp.float32)
         + jnp.dot(i, w1i_ref[...], preferred_element_type=jnp.float32)
         + b1_ref[...])
    return jnp.maximum(h, 0.0)                           # ReLU, (TB, H) f32


def _cvr_tail(h, w2_ref, b2_ref):
    # 64 -> 1 projection as w2(1,H) @ h^T -> (1, TB): lane-dense output row
    # instead of an N=1 matmul producing a masked (TB, 1) column.
    z = lax.dot_general(w2_ref[...], h,
                        dimension_numbers=(((1,), (1,)), ((), ())),
                        preferred_element_type=jnp.float32)
    return jax.nn.sigmoid(z + b2_ref[0, 0])              # scalar bias from SMEM


def _cvr_kernel(u_ref, i_ref, w1u_ref, w1i_ref, b1_ref, w2_ref, b2_ref, o_ref):
    h = _cvr_hidden(u_ref[...], i_ref[...], w1u_ref, w1i_ref, b1_ref)
    o_ref[...] = _cvr_tail(h, w2_ref, b2_ref)


def _fused_kernel(u_ref, i_ref, w1u_ref, w1i_ref, b1_ref, w2_ref, b2_ref,
                  ctr_ref, cvr_ref):
    # CTR and CVR share the gathered u/i tiles -> embeddings read once.
    u = u_ref[...]
    i = i_ref[...]
    ctr_ref[...] = jax.nn.sigmoid(
        _row_dot_lane_dense(u.astype(jnp.float32), i.astype(jnp.float32)))
    h = _cvr_hidden(u, i, w1u_ref, w1i_ref, b1_ref)
    cvr_ref[...] = _cvr_tail(h, w2_ref, b2_ref)


# ---------------------------------------------------------------------------
# BlockSpec helpers
# ---------------------------------------------------------------------------
def _batch_spec(tb, d):
    # Batch-tiled activation blocks (last tile may be partial; Pallas masks it).
    return pl.BlockSpec((tb, d), lambda g: (g, 0))


def _const_spec(shape):
    # Weights/biases: same block every grid step -> DMA'd once, VMEM-resident.
    return pl.BlockSpec(shape, lambda g: (0,) * len(shape))


def _out_spec(tb):
    # Lane-dense (1, TB) output row per grid step into a (1, grid*TB) slab.
    return pl.BlockSpec((1, tb), lambda g: (0, g))


_SMEM_SCALAR = pl.BlockSpec(memory_space=pltpu.MemorySpace.SMEM)

_COMPILER_PARAMS = pltpu.CompilerParams(
    dimension_semantics=("parallel",),          # batch tiles shard across TCs
    vmem_limit_bytes=32 * 1024 * 1024,          # headroom for 8192-row fused tiles on v5e
)


# ---------------------------------------------------------------------------
# pallas_call wrappers
# ---------------------------------------------------------------------------
def ctr_pallas(uembed, iembed):
    B, D = uembed.shape
    tb, grid = _batch_tiling(B)
    out = pl.pallas_call(
        _ctr_kernel,
        out_shape=jax.ShapeDtypeStruct((1, grid * tb), jnp.float32),
        grid=(grid,),
        in_specs=[_batch_spec(tb, D), _batch_spec(tb, D)],
        out_specs=_out_spec(tb),
        compiler_params=_COMPILER_PARAMS,
    )(uembed, iembed)
    return out[0, :B]


def _cvr_params(w1, b1, w2, b2):
    D = w1.shape[0] // 2
    H = w1.shape[1]
    w1u, w1i = w1[:D], w1[D:]                      # split of the concat weight
    b1_2d = b1.reshape(1, H).astype(jnp.float32)   # added to f32 accumulator
    w2_row = w2.reshape(1, H).astype(jnp.float32)  # (H,1) -> (1,H) for w2 @ h^T
    b2_2d = b2.reshape(1, 1).astype(jnp.float32)
    return w1u, w1i, b1_2d, w2_row, b2_2d


def _cvr_in_specs(tb, D, H):
    return [
        _batch_spec(tb, D),          # uembed tile
        _batch_spec(tb, D),          # iembed tile
        _const_spec((D, H)),         # W1[:D]   (resident)
        _const_spec((D, H)),         # W1[D:]   (resident)
        _const_spec((1, H)),         # b1       (resident)
        _const_spec((1, H)),         # w2 row   (resident)
        _SMEM_SCALAR,                # b2 scalar in SMEM
    ]


def cvr_pallas(uembed, iembed, w1, b1, w2, b2):
    B, D = uembed.shape
    H = w1.shape[1]
    tb, grid = _batch_tiling(B)
    params = _cvr_params(w1, b1, w2, b2)
    out = pl.pallas_call(
        _cvr_kernel,
        out_shape=jax.ShapeDtypeStruct((1, grid * tb), jnp.float32),
        grid=(grid,),
        in_specs=_cvr_in_specs(tb, D, H),
        out_specs=_out_spec(tb),
        compiler_params=_COMPILER_PARAMS,
    )(uembed, iembed, *params)
    return out[0, :B]


def ctr_cvr_pallas(uembed, iembed, w1, b1, w2, b2):
    """Fused CTR+CVR: reads the gathered embeddings from HBM once."""
    B, D = uembed.shape
    H = w1.shape[1]
    tb, grid = _batch_tiling(B)
    params = _cvr_params(w1, b1, w2, b2)
    ctr, cvr = pl.pallas_call(
        _fused_kernel,
        out_shape=(jax.ShapeDtypeStruct((1, grid * tb), jnp.float32),
                   jax.ShapeDtypeStruct((1, grid * tb), jnp.float32)),
        grid=(grid,),
        in_specs=_cvr_in_specs(tb, D, H),
        out_specs=[_out_spec(tb), _out_spec(tb)],
        compiler_params=_COMPILER_PARAMS,
    )(uembed, iembed, *params)
    return ctr[0, :B], cvr[0, :B]


# ---------------------------------------------------------------------------
# Jitted end-to-end forwards (gather + kernel + slice in one XLA program)
# ---------------------------------------------------------------------------
@jax.jit
def _forward_ctr(uE, iE, userIdx, itemIdx):
    u = jnp.take(uE, userIdx, axis=0)
    i = jnp.take(iE, itemIdx, axis=0)
    return ctr_pallas(u, i)


@jax.jit
def _forward_cvr(uE, iE, w1, b1, w2, b2, userIdx, itemIdx):
    u = jnp.take(uE, userIdx, axis=0)
    i = jnp.take(iE, itemIdx, axis=0)
    return cvr_pallas(u, i, w1, b1, w2, b2)


@jax.jit
def _forward_both(uE, iE, w1, b1, w2, b2, userIdx, itemIdx):
    u = jnp.take(uE, userIdx, axis=0)
    i = jnp.take(iE, itemIdx, axis=0)
    return ctr_cvr_pallas(u, i, w1, b1, w2, b2)


# ---------------------------------------------------------------------------
# Module-equivalent wrapper
# ---------------------------------------------------------------------------
class AdFairPallas:
    def __init__(self, userNum, itemNum, dim, feature_num, key,
                 param_dtype=jnp.float32):
        # param_dtype=jnp.bfloat16 halves HBM traffic for the tables and W1
        # (kernel accumulates in f32); default f32 matches PyTorch numerics.
        k1, k2, k3, k4, k5, k6 = jax.random.split(key, 6)
        # nn.init.normal_(std=0.01) for both embedding tables
        self.uEmbed = (0.01 * jax.random.normal(k1, (userNum, dim), jnp.float32)
                       ).astype(param_dtype)
        self.iEmbed = (0.01 * jax.random.normal(k2, (itemNum, dim), jnp.float32)
                       ).astype(param_dtype)
        # cvr: Linear(dim*2, 64); cvr1: Linear(64, 1) -- stored as (in, out)
        bound1 = 1.0 / jnp.sqrt(2.0 * dim)
        bound2 = 1.0 / jnp.sqrt(64.0)
        self.cvr_w = jax.random.uniform(k3, (2 * dim, 64), jnp.float32,
                                        -bound1, bound1).astype(param_dtype)
        self.cvr_b = jax.random.uniform(k4, (64,), jnp.float32, -bound1, bound1)
        self.cvr1_w = jax.random.uniform(k5, (64, 1), jnp.float32, -bound2, bound2)
        self.cvr1_b = jax.random.uniform(k6, (1,), jnp.float32, -bound2, bound2)
        self.dim = dim
        self.feature_num = feature_num
        # TODO(synk): isequential (Linear+Tanh+BatchNorm1d) is only used by
        # apply_filter(), not by forward(); it is not implemented here.

    def forward(self, userIdx, itemIdx, task):
        if task == 'ctr':
            return _forward_ctr(self.uEmbed, self.iEmbed, userIdx, itemIdx)
        elif task == 'cvr':
            return _forward_cvr(self.uEmbed, self.iEmbed, self.cvr_w, self.cvr_b,
                                self.cvr1_w, self.cvr1_b, userIdx, itemIdx)
        else:
            raise ValueError(task)

    def forward_both(self, userIdx, itemIdx):
        # Fused path for callers (do_recommendation / create_loss) that need
        # both heads on the same batch: halves embedding HBM traffic.
        return _forward_both(self.uEmbed, self.iEmbed, self.cvr_w, self.cvr_b,
                             self.cvr1_w, self.cvr1_b, userIdx, itemIdx)


# ---------------------------------------------------------------------------
# Pure-JAX reference for sanity checking
# ---------------------------------------------------------------------------
def _reference(model, userIdx, itemIdx, task):
    u = jnp.take(model.uEmbed, userIdx, axis=0).astype(jnp.float32)
    i = jnp.take(model.iEmbed, itemIdx, axis=0).astype(jnp.float32)
    if task == 'ctr':
        return jax.nn.sigmoid(jnp.sum(u * i, axis=1))
    x = jnp.concatenate([u, i], axis=1)
    h = jnp.maximum(x @ model.cvr_w.astype(jnp.float32) + model.cvr_b, 0.0)
    return jax.nn.sigmoid(h @ model.cvr1_w + model.cvr1_b).reshape(-1)


def _check(model, userIdx, itemIdx, tol):
    ctr_out = jax.block_until_ready(model.forward(userIdx, itemIdx, 'ctr'))
    cvr_out = jax.block_until_ready(model.forward(userIdx, itemIdx, 'cvr'))
    ctr_f, cvr_f = model.forward_both(userIdx, itemIdx)
    ctr_f = jax.block_until_ready(ctr_f)
    cvr_f = jax.block_until_ready(cvr_f)

    ctr_ref = _reference(model, userIdx, itemIdx, 'ctr')
    cvr_ref = _reference(model, userIdx, itemIdx, 'cvr')

    B = userIdx.shape[0]
    assert ctr_out.shape == (B,) and cvr_out.shape == (B,)
    assert jnp.allclose(ctr_out, ctr_ref, atol=tol, rtol=tol)
    assert jnp.allclose(cvr_out, cvr_ref, atol=tol, rtol=tol)
    assert jnp.allclose(ctr_f, ctr_ref, atol=tol, rtol=tol)
    assert jnp.allclose(cvr_f, cvr_ref, atol=tol, rtol=tol)


if __name__ == "__main__":
    key = jax.random.PRNGKey(0)
    k_model, k_u, k_i, k_u2, k_i2 = jax.random.split(key, 5)

    userNum, itemNum, dim, feature_num = 32, 40, 32, 3

    # f32 model (exact PyTorch semantics) -- small batch, single full-block tile.
    model = AdFairPallas(userNum, itemNum, dim, feature_num, k_model)
    batch = 8
    userIdx = jax.random.randint(k_u, (batch,), 0, userNum, dtype=jnp.int32)
    itemIdx = jax.random.randint(k_i, (batch,), 0, itemNum, dtype=jnp.int32)
    _check(model, userIdx, itemIdx, tol=2e-5)

    # Larger batch that exercises batch tiling (grid=3) and a partial last tile.
    batch2 = 300
    userIdx2 = jax.random.randint(k_u2, (batch2,), 0, userNum, dtype=jnp.int32)
    itemIdx2 = jax.random.randint(k_i2, (batch2,), 0, itemNum, dtype=jnp.int32)
    _check(model, userIdx2, itemIdx2, tol=2e-5)

    # bf16 parameter storage (halved HBM traffic on the mem-bound kernel).
    model_bf16 = AdFairPallas(userNum, itemNum, dim, feature_num, k_model,
                              param_dtype=jnp.bfloat16)
    _check(model_bf16, userIdx2, itemIdx2, tol=1e-4)

    print("KERNEL_OK")
</pallas_src>

<mosaic_0001>
module attributes {stable_mosaic.version = 11 : i64} {
  func.func @_ctr_kernel(%arg0: i32, %arg1: memref<8x32xf32, #tpu.memory_space<vmem>>, %arg2: memref<8x32xf32, #tpu.memory_space<vmem>>, %arg3: memref<1x8xf32, #tpu.memory_space<vmem>>) attributes {dimension_semantics = [#tpu.dimension_semantics<parallel>], iteration_bounds = array<i64: 1>, scalar_prefetch = 0 : i64, scratch_operands = 0 : i64, tpu.core_type = #tpu.core_type<tc>, window_params = [{transform_indices = @transform_0, window_bounds = array<i64: 8, 32>}, {transform_indices = @transform_1, window_bounds = array<i64: 8, 32>}, {transform_indices = @transform_2, window_bounds = array<i64: 1, 8>}]} {
    %c0 = arith.constant 0 : index
    %c0_0 = arith.constant 0 : index
    %0 = vector.load %arg1[%c0, %c0_0] : memref<8x32xf32, #tpu.memory_space<vmem>>, vector<8x32xf32>
    %c0_1 = arith.constant 0 : index
    %c0_2 = arith.constant 0 : index
    %1 = vector.load %arg2[%c0_1, %c0_2] : memref<8x32xf32, #tpu.memory_space<vmem>>, vector<8x32xf32>
    %2 = arith.mulf %0, %1 : vector<8x32xf32>
    %cst = arith.constant 1.000000e+00 : f32
    %3 = vector.broadcast %cst : f32 to vector<1x32xf32>
    %cst_3 = arith.constant dense<0.000000e+00> : vector<1x8xf32>
    %4 = tpu.matmul %3, %2, %cst_3 {dimension_numbers = #tpu.dot_dimension_numbers<[1], [1], [0], [0], [0, 0, 1, 0], [], []>} : vector<1x32xf32>, vector<8x32xf32>, vector<1x8xf32> -> vector<1x8xf32>
    %5 = arith.negf %4 : vector<1x8xf32>
    %6 = math.exp %5 : vector<1x8xf32>
    %cst_4 = arith.constant 1.000000e+00 : f32
    %7 = vector.broadcast %cst_4 : f32 to vector<1x8xf32>
    %8 = arith.addf %7, %6 : vector<1x8xf32>
    %9 = arith.divf %7, %8 : vector<1x8xf32>
    %c0_5 = arith.constant 0 : index
    %c0_6 = arith.constant 0 : index
    %10 = vector.load %arg3[%c0_5, %c0_6] : memref<1x8xf32, #tpu.memory_space<vmem>>, vector<1x8xf32>
    tpu.vector_store %arg3[%c0_5, %c0_6], %9 {strides = array<i32>} : memref<1x8xf32, #tpu.memory_space<vmem>>, vector<1x8xf32>,
    return
  }
  func.func @transform_0(%arg0: i32) -> (i32, i32) {
    %c0_i32 = arith.constant 0 : i32
    %c0_i32_0 = arith.constant 0 : i32
    return %arg0, %c0_i32 : i32, i32
  }
  func.func @transform_1(%arg0: i32) -> (i32, i32) {
    %c0_i32 = arith.constant 0 : i32
    %c0_i32_0 = arith.constant 0 : i32
    return %arg0, %c0_i32 : i32, i32
  }
  func.func @transform_2(%arg0: i32) -> (i32, i32) {
    %c0_i32 = arith.constant 0 : i32
    %c0_i32_0 = arith.constant 0 : i32
    return %c0_i32, %arg0 : i32, i32
  }
}

</mosaic_0001>

<llo_original>
// kernel: _forward_ctr.1
$region0: #{_forward_ctr.1}
  #allocation0 [shape = 'u32[]', space=smem, size = 0x4, offset = 0x4, fixed_abs, tag = 'smem constant byte address 0x4 - core index']
  #allocation1 [shape = 'u32[72,128]{1,0:T(1,128)}', space=vmem, size = 0x9000, scoped, tag = 'internal scratch']
  %s0 = inlined_call_operand.vmem [shape: f32[8,32], index: 0, kind: input, shape index: {}]
  %s1 = inlined_call_operand.vmem [shape: f32[8,32], index: 1, kind: input, shape index: {}]
  %s2 = inlined_call_operand.hbm [shape: f32[1,8], index: 2, kind: output, shape index: {}]
  %s3 = sld [smem:[#allocation0]]
  $region18: #{_forward_ctr.1} parent=0
    _
  %s5 = ssub.s32 1, %s3
  %s6 = scalar_select 0, %s5, %s3
  $region1: #{_forward_ctr.1} parent=0
    #allocation2 [shape = 'u8[512]{0}', space=vmem, size = 0x400, scoped, tag = 'output window, operand 0, single buffered']
    #allocation3 [shape = 's32[1]{0}', space=sflag, size = 0x4, scoped, tag = 'scoped memory for _forward_ctr.1']
    %7 = vsyncpa [#allocation3], 0
    // Predicated region
    $region2: #{_forward_ctr.1} parent=1 // pred_check
      _
    $region3: #{_forward_ctr.1} parent=1 // pred_check_branch
      %9 = sbr.rel (0) target = $region5
    $region4: #{_forward_ctr.1} parent=1 // pred_region
      _
    $region5: #{_forward_ctr.1} parent=1 // pred_fallthru
      _
    // Predicated region
    $region6: #{_forward_ctr.1} parent=1 // pred_check
      _
    $region7: #{_forward_ctr.1} parent=1 // pred_check_branch
      %11 = sbr.rel (0) target = $region9
    $region8: #{_forward_ctr.1} parent=1 // pred_region
      _
    $region9: #{_forward_ctr.1} parent=1 // pred_fallthru
      _
    %v12 = vld [vmem:[%s0] sm:$0xff]
    %v13 = vld [vmem:[%s1] sm:$0xff]
    %v14 = vmul.f32 %v12, %v13
    %vm15 = vcmask 261120
    %v17 = vsel %vm15, 1.0, 0
    %v20 = vsel %vm15, %v14, 0
    %22 = vmatpush.xpose.msra.mxu0 0.0
    %23 = vmatpush.xpose.msra.mxu0 0.0
    %24 = vmatpush.xpose.msra.mxu0 0.0
    %25 = vmatpush.xpose.msra.mxu0 0.0
    %26 = vmatpush.xpose.msra.mxu0 0.0
    %27 = vmatpush.xpose.msra.mxu0 0.0
    %28 = vmatpush.xpose.msra.mxu0 0.0
    %29 = vmatpush.xpose.msra.mxu0 0.0
    %30 = vmatpush.xpose.msra.mxu0 0.0
    %31 = vmatpush.xpose.msra.mxu0 0.0
    %32 = vmatpush.xpose.msra.mxu0 0.0
    %33 = vmatpush.xpose.msra.mxu0 0.0
    %34 = vmatpush.xpose.msra.mxu0 0.0
    %35 = vmatpush.xpose.msra.mxu0 0.0
    %36 = vmatpush.xpose.msra.mxu0 0.0
    %37 = vmatpush.xpose.msra.mxu0 %v20
    %38 = vmatmul.f32.gmra.mxu0 %v17
    %v39 = vpop.f32.mrf.mxu0
    %v40 = vadd.f32 0.0, %v39
    %41 = vdwg.mxu0
    %v42 = vxor.u32 %v40, 2147483648
    %v43 = vmul.f32 %v42, 1.442695
    %v44 = vpow.pop %v43
    %v45 = vadd.f32 %v44, 1.0
    %v46 = vrcp.pop %v45
    %v47 = vmul.f32 %v45, %v46
    %v48 = vsub.f32 1.0, %v47
    %v49 = vmul.f32 %v46, %v48
    %v50 = vadd.f32 %v46, %v49
    %vm51 = vweird.f32 %v45
    %vm52 = vweird.f32 %v46
    %vm53 = vmor %vm51, %vm52
    %v54 = vsel %vm53, %v46, %v50
    %v55 = vand.u32 2147483647, %v45
    %vm56 = vcmp.eq.f32.partialorder %v55, 8.507059e+37
    %v57 = vand.u32 %v45, 2147483648
    %v58 = vor.u32 1.1754944e-38, %v57
    %v59 = vsel %vm56, %v58, %v54
    %v60 = vmul.f32 1.0, %v59
    %vm61 = vcmask 57344
    %62 = vst.msk [vmem:[#allocation2] sm:$0x1] %vm61, %v60
    // Predicated region
    $region10: #{_forward_ctr.1} parent=1 // pred_check
      _
    $region11: #{_forward_ctr.1} parent=1 // pred_check_branch
      %64 = sbr.rel (0) target = $region13
    $region12: #{_forward_ctr.1} parent=1 // pred_region
      %66 = vsyncadd [#allocation3], 0
      %s68 = sshll.u32 [#allocation2], 4
      %s69 = int_to_ptr.vmem [resolvable:$true] %s68
      %s70 = sshll.u32 %s2, 4
      %s71 = int_to_ptr.hbm [resolvable:$true] %s70
      %73 = dma.vmem_to_hbm [thread:$0]  %s69, 16, %s71, [#allocation3]
    $region13: #{_forward_ctr.1} parent=1 // pred_fallthru
      _
    // Predicated region
    $region14: #{_forward_ctr.1} parent=1 // pred_check
      _
    $region15: #{_forward_ctr.1} parent=1 // pred_check_branch
      %75 = sbr.rel (0) target = $region17
    $region16: #{_forward_ctr.1} parent=1 // pred_region
      %77 = dma.done [#allocation3], 16
    $region17: #{_forward_ctr.1} parent=1 // pred_fallthru
      _
    %78 = vsyncpa [#allocation3], 1

</llo_original>
